<compile_context>
chip_gen: v5e
topology: v5e:2x2
jax: 0.10.0
libtpu: 0.0.40
codegen_flags: <defaults>
</compile_context>

<pallas_src>
import jax
import jax.numpy as jnp
from jax.experimental import pallas as pl
from jax.experimental.pallas import tpu as pltpu


# ---------------------------------------------------------------------------
# helpers
# ---------------------------------------------------------------------------

def _round_up(x: int, m: int) -> int:
    return (x + m - 1) // m * m


def _cdiv(a: int, b: int) -> int:
    return -(-a // b)


def _choose_batch_tile(N: int, max_tile: int = 512):
    """Pick (TB, NP): minimal padding; >=2 tiles for v7x megacore when N is big."""
    n16 = _round_up(max(int(N), 1), 16)          # bf16 sublane-pack friendly
    n_tiles = max(_cdiv(n16, max_tile), 1)
    if n_tiles == 1 and n16 >= 256:
        n_tiles = 2                               # keep both v7x TensorCores busy
    tb = _round_up(_cdiv(n16, n_tiles), 16)
    return tb, tb * n_tiles


def _pad_params(W1, b1, W2, b2):
    """Pre-transpose to (in, out), pad to lane multiples, cast weights to bf16."""
    H, M = W1.shape          # torch layout: W1 (300, M)
    Dout, H2 = W2.shape      # torch layout: W2 (D, 300)
    assert H2 == H
    MP = max(_round_up(M, 128), 128)
    HP = max(_round_up(H, 128), 128)      # 300 -> 384
    DP = max(_round_up(Dout, 128), 128)
    w1p = jnp.zeros((MP, HP), jnp.float32).at[:M, :H].set(W1.T).astype(jnp.bfloat16)
    b1p = jnp.zeros((1, HP), jnp.float32).at[:, :H].set(b1)     # pad bias stays 0
    w2p = jnp.zeros((HP, DP), jnp.float32).at[:H, :Dout].set(W2.T).astype(jnp.bfloat16)
    b2p = jnp.zeros((1, DP), jnp.float32).at[:, :Dout].set(b2)
    return w1p, b1p, w2p, b2p, MP, HP, DP


# ---------------------------------------------------------------------------
# kernel
# ---------------------------------------------------------------------------

def _generator_kernel(z_ref, w1_ref, b1_ref, w2_ref, b2_ref, out_ref):
    """Fused gen1 -> relu -> gen2 for one batch tile (bf16 MXU, f32 accumulate)."""
    h = jnp.dot(z_ref[...], w1_ref[...], preferred_element_type=jnp.float32)
    h = jnp.maximum(h + b1_ref[...], 0.0)                  # bias + ReLU on VPU, f32
    y = jnp.dot(h.astype(jnp.bfloat16), w2_ref[...],
                preferred_element_type=jnp.float32)
    out_ref[...] = (y + b2_ref[...]).astype(out_ref.dtype)


def _mlp_pallas(zp, w1p, b1p, w2p, b2p, tb, out_dtype):
    NP, MP = zp.shape
    HP = w1p.shape[1]
    DP = w2p.shape[1]
    grid = (NP // tb,)
    return pl.pallas_call(
        _generator_kernel,
        out_shape=jax.ShapeDtypeStruct((NP, DP), out_dtype),
        grid=grid,
        in_specs=[
            pl.BlockSpec((tb, MP), lambda i: (i, 0)),   # z batch tile (bf16, lane-dense)
            pl.BlockSpec((MP, HP), lambda i: (0, 0)),   # W1p resident in VMEM
            pl.BlockSpec((1, HP), lambda i: (0, 0)),    # b1p resident
            pl.BlockSpec((HP, DP), lambda i: (0, 0)),   # W2p resident
            pl.BlockSpec((1, DP), lambda i: (0, 0)),    # b2p resident
        ],
        out_specs=pl.BlockSpec((tb, DP), lambda i: (i, 0)),
        compiler_params=pltpu.CompilerParams(
            dimension_semantics=("parallel",),          # megacore / v7x dual-TC sharding
            vmem_limit_bytes=32 * 1024 * 1024,          # working set is only a few MiB
        ),
    )(zp, w1p, b1p, w2p, b2p)


# ---------------------------------------------------------------------------
# wrappers
# ---------------------------------------------------------------------------

def generator_forward(W1, b1, W2, b2, x_real, *, key=None, seed=0,
                      batch_tile=512, out_dtype=jnp.float32):
    """Equivalent of Generator.forward(x_real): returns x_gen of shape (N, D)."""
    N = int(x_real.shape[0])
    H, M = W1.shape
    Dout = W2.shape[0]
    # Original torch code samples z = randn(N, self.D) and feeds gen1 (M -> 300);
    # this only works when D == M, so keep that invariant explicit.
    assert Dout == M, "Generator requires D == M (torch code samples z with self.D)"
    if key is None:
        key = jax.random.PRNGKey(seed)

    w1p, b1p, w2p, b2p, MP, HP, DP = _pad_params(W1, b1, W2, b2)
    tb, NP = _choose_batch_tile(N, batch_tile)
    # Sample directly at the padded shape: pad columns hit all-zero W1 rows
    # (inert) and pad rows are sliced off below -> no separate pad/copy op,
    # and z goes to the kernel already in bf16 (half the HBM read).
    z = jax.random.normal(key, (NP, MP), jnp.float32).astype(jnp.bfloat16)
    out = _mlp_pallas(z, w1p, b1p, w2p, b2p, tb, out_dtype)
    if NP == N and DP == Dout:
        return out                      # no padding -> skip the HBM->HBM slice copy
    return out[:N, :Dout]


def generator_apply_with_z(W1, b1, W2, b2, z, *, batch_tile=512,
                           out_dtype=jnp.float32):
    """Same fused MLP but with an externally supplied z (used to verify the math)."""
    N, M_in = z.shape
    H, M = W1.shape
    Dout = W2.shape[0]
    assert M_in == M

    w1p, b1p, w2p, b2p, MP, HP, DP = _pad_params(W1, b1, W2, b2)
    tb, NP = _choose_batch_tile(N, batch_tile)
    zp = jnp.zeros((NP, MP), jnp.bfloat16).at[:N, :M].set(z.astype(jnp.bfloat16))
    out = _mlp_pallas(zp, w1p, b1p, w2p, b2p, tb, out_dtype)
    if NP == N and DP == Dout:
        return out
    return out[:N, :Dout]


def _reference_with_z(W1, b1, W2, b2, z):
    """Pure-JAX reference using the same bf16-weight / f32-accumulate recipe."""
    h = jnp.dot(z.astype(jnp.bfloat16), W1.T.astype(jnp.bfloat16),
                preferred_element_type=jnp.float32)
    h = jnp.maximum(h + b1, 0.0)
    y = jnp.dot(h.astype(jnp.bfloat16), W2.T.astype(jnp.bfloat16),
                preferred_element_type=jnp.float32)
    return y + b2


# ---------------------------------------------------------------------------
# demo / self-check
# ---------------------------------------------------------------------------

if __name__ == "__main__":
    key = jax.random.PRNGKey(0)
    # Small, module-consistent shapes: latent/data dim D == M == 256 (lane-aligned),
    # hidden = 300 exactly as in the module (padded to 384 inside the wrapper).
    N, D_FEAT, HID = 8, 256, 300
    M_LAT = D_FEAT

    ks = jax.random.split(key, 6)
    W1 = jax.random.normal(ks[0], (HID, M_LAT), jnp.float32) * 0.05   # gen1.weight (torch layout)
    b1 = jax.random.normal(ks[1], (HID,), jnp.float32) * 0.05         # gen1.bias
    W2 = jax.random.normal(ks[2], (D_FEAT, HID), jnp.float32) * 0.05  # gen2.weight
    b2 = jax.random.normal(ks[3], (D_FEAT,), jnp.float32) * 0.05      # gen2.bias
    x_real = jax.random.normal(ks[4], (N, D_FEAT), jnp.float32)       # only batch size is used

    # (a) verify the fused matmul / bias / ReLU path against pure JAX with a known z
    z = jax.random.normal(ks[5], (N, M_LAT), jnp.float32)
    y_kernel = jax.block_until_ready(generator_apply_with_z(W1, b1, W2, b2, z))
    y_ref = _reference_with_z(W1, b1, W2, b2, z)
    assert y_kernel.shape == (N, D_FEAT)
    max_err = float(jnp.max(jnp.abs(y_kernel - y_ref)))
    assert jnp.allclose(y_kernel, y_ref, rtol=2e-2, atol=2e-2), max_err

    # (b) full forward: randn (wrapper, exact N(0,1)) -> fused gen1 -> relu -> gen2
    x_gen = jax.block_until_ready(generator_forward(W1, b1, W2, b2, x_real, seed=0))
    assert x_gen.shape == (N, D_FEAT)
    assert bool(jnp.all(jnp.isfinite(x_gen)))

    print("KERNEL_OK")
</pallas_src>

<mosaic_0001>
module attributes {stable_mosaic.version = 11 : i64} {
  func.func @_generator_kernel(%arg0: i32, %arg1: memref<16x256xbf16, #tpu.memory_space<vmem>>, %arg2: memref<256x384xbf16, #tpu.memory_space<vmem>>, %arg3: memref<1x384xf32, #tpu.memory_space<vmem>>, %arg4: memref<384x256xbf16, #tpu.memory_space<vmem>>, %arg5: memref<1x256xf32, #tpu.memory_space<vmem>>, %arg6: memref<16x256xf32, #tpu.memory_space<vmem>>) attributes {dimension_semantics = [#tpu.dimension_semantics<parallel>], iteration_bounds = array<i64: 1>, scalar_prefetch = 0 : i64, scratch_operands = 0 : i64, tpu.core_type = #tpu.core_type<tc>, window_params = [{transform_indices = @transform_0, window_bounds = array<i64: 16, 256>}, {pipeline_mode = #tpu.pipeline_mode<synchronous>, transform_indices = @transform_1, window_bounds = array<i64: 256, 384>}, {pipeline_mode = #tpu.pipeline_mode<synchronous>, transform_indices = @transform_2, window_bounds = array<i64: 1, 384>}, {pipeline_mode = #tpu.pipeline_mode<synchronous>, transform_indices = @transform_3, window_bounds = array<i64: 384, 256>}, {pipeline_mode = #tpu.pipeline_mode<synchronous>, transform_indices = @transform_4, window_bounds = array<i64: 1, 256>}, {transform_indices = @transform_5, window_bounds = array<i64: 16, 256>}]} {
    %c0 = arith.constant 0 : index
    %c0_0 = arith.constant 0 : index
    %0 = vector.load %arg1[%c0, %c0_0] : memref<16x256xbf16, #tpu.memory_space<vmem>>, vector<16x256xbf16>
    %c0_1 = arith.constant 0 : index
    %c0_2 = arith.constant 0 : index
    %1 = vector.load %arg2[%c0_1, %c0_2] : memref<256x384xbf16, #tpu.memory_space<vmem>>, vector<256x384xbf16>
    %cst = arith.constant dense<0.000000e+00> : vector<16x384xf32>
    %2 = tpu.matmul %0, %1, %cst {dimension_numbers = #tpu.dot_dimension_numbers<[1], [0], [0], [1], [0, 0, 1, 1], [], []>} : vector<16x256xbf16>, vector<256x384xbf16>, vector<16x384xf32> -> vector<16x384xf32>
    %c0_3 = arith.constant 0 : index
    %c0_4 = arith.constant 0 : index
    %3 = vector.load %arg3[%c0_3, %c0_4] : memref<1x384xf32, #tpu.memory_space<vmem>>, vector<1x384xf32>
    %4 = vector.broadcast %3 : vector<1x384xf32> to vector<16x384xf32>
    %5 = arith.addf %2, %4 : vector<16x384xf32>
    %cst_5 = arith.constant 0.000000e+00 : f32
    %6 = vector.broadcast %cst_5 : f32 to vector<16x384xf32>
    %7 = arith.maximumf %5, %6 : vector<16x384xf32>
    %8 = arith.truncf %7 : vector<16x384xf32> to vector<16x384xbf16>
    %c0_6 = arith.constant 0 : index
    %c0_7 = arith.constant 0 : index
    %9 = vector.load %arg4[%c0_6, %c0_7] : memref<384x256xbf16, #tpu.memory_space<vmem>>, vector<384x256xbf16>
    %cst_8 = arith.constant dense<0.000000e+00> : vector<16x256xf32>
    %10 = tpu.matmul %8, %9, %cst_8 {dimension_numbers = #tpu.dot_dimension_numbers<[1], [0], [0], [1], [0, 0, 1, 1], [], []>} : vector<16x384xbf16>, vector<384x256xbf16>, vector<16x256xf32> -> vector<16x256xf32>
    %c0_9 = arith.constant 0 : index
    %c0_10 = arith.constant 0 : index
    %11 = vector.load %arg5[%c0_9, %c0_10] : memref<1x256xf32, #tpu.memory_space<vmem>>, vector<1x256xf32>
    %12 = vector.broadcast %11 : vector<1x256xf32> to vector<16x256xf32>
    %13 = arith.addf %10, %12 : vector<16x256xf32>
    %c0_11 = arith.constant 0 : index
    %c0_12 = arith.constant 0 : index
    %14 = vector.load %arg6[%c0_11, %c0_12] : memref<16x256xf32, #tpu.memory_space<vmem>>, vector<16x256xf32>
    tpu.vector_store %arg6[%c0_11, %c0_12], %13 {strides = array<i32>} : memref<16x256xf32, #tpu.memory_space<vmem>>, vector<16x256xf32>,
    return
  }
  func.func @transform_0(%arg0: i32) -> (i32, i32) {
    %c0_i32 = arith.constant 0 : i32
    %c0_i32_0 = arith.constant 0 : i32
    return %arg0, %c0_i32 : i32, i32
  }
  func.func @transform_1(%arg0: i32) -> (i32, i32) {
    %c0_i32 = arith.constant 0 : i32
    %c0_i32_0 = arith.constant 0 : i32
    %c0_i32_1 = arith.constant 0 : i32
    return %c0_i32, %c0_i32_0 : i32, i32
  }
  func.func @transform_2(%arg0: i32) -> (i32, i32) {
    %c0_i32 = arith.constant 0 : i32
    %c0_i32_0 = arith.constant 0 : i32
    %c0_i32_1 = arith.constant 0 : i32
    return %c0_i32, %c0_i32_0 : i32, i32
  }
  func.func @transform_3(%arg0: i32) -> (i32, i32) {
    %c0_i32 = arith.constant 0 : i32
    %c0_i32_0 = arith.constant 0 : i32
    %c0_i32_1 = arith.constant 0 : i32
    return %c0_i32, %c0_i32_0 : i32, i32
  }
  func.func @transform_4(%arg0: i32) -> (i32, i32) {
    %c0_i32 = arith.constant 0 : i32
    %c0_i32_0 = arith.constant 0 : i32
    %c0_i32_1 = arith.constant 0 : i32
    return %c0_i32, %c0_i32_0 : i32, i32
  }
  func.func @transform_5(%arg0: i32) -> (i32, i32) {
    %c0_i32 = arith.constant 0 : i32
    %c0_i32_0 = arith.constant 0 : i32
    return %arg0, %c0_i32 : i32, i32
  }
}

</mosaic_0001>

<llo_original>
// kernel: tpu_custom_call.1
$region0: #{tpu_custom_call.1}
  #allocation0 [shape = 'u32[]', space=smem, size = 0x4, offset = 0x4, fixed_abs, tag = 'smem constant byte address 0x4 - core index']
  #allocation1 [shape = 'u32[72,128]{1,0:T(1,128)}', space=vmem, size = 0x9000, scoped, tag = 'internal scratch']
  %s0 = inlined_call_operand.hbm [shape: bf16[16,256], index: 0, kind: input, shape index: {}]
  %s1 = inlined_call_operand.hbm [shape: bf16[256,384], index: 1, kind: input, shape index: {}]
  %s2 = inlined_call_operand.hbm [shape: f32[1,384], index: 2, kind: input, shape index: {}]
  %s3 = inlined_call_operand.hbm [shape: bf16[384,256], index: 3, kind: input, shape index: {}]
  %s4 = inlined_call_operand.vmem [shape: f32[1,256], index: 4, kind: input, shape index: {}]
  %s5 = inlined_call_operand.hbm [shape: f32[16,256], index: 5, kind: output, shape index: {}]
  %s6 = sld [smem:[#allocation0]]
  $region46: #{tpu_custom_call.1} parent=0
    _
  %s8 = ssub.s32 1, %s6
  %s9 = scalar_select 0, %s8, %s6
  $region1: #{tpu_custom_call.1} parent=0
    #allocation2 [shape = 'u8[8192]{0}', space=vmem, size = 0x2000, scoped, tag = 'input window, operand 0, single buffered']
    #allocation3 [shape = 's32[1]{0}', space=sflag, size = 0x4, scoped, tag = 'scoped memory for tpu_custom_call.1']
    #allocation4 [shape = 's32[1]{0}', space=sflag, size = 0x4, scoped, tag = 'scoped memory for tpu_custom_call.1']
    #allocation5 [shape = 'u8[196608]{0}', space=vmem, size = 0x30000, scoped, tag = 'input window, operand 1, single buffered']
    #allocation6 [shape = 's32[1]{0}', space=sflag, size = 0x4, scoped, tag = 'scoped memory for tpu_custom_call.1']
    #allocation7 [shape = 'u8[1536]{0}', space=vmem, size = 0x800, scoped, tag = 'input window, operand 2, single buffered']
    #allocation8 [shape = 'u8[196608]{0}', space=vmem, size = 0x30000, scoped, tag = 'input window, operand 3, single buffered']
    #allocation9 [shape = 's32[1]{0}', space=sflag, size = 0x4, scoped, tag = 'scoped memory for tpu_custom_call.1']
    #allocation10 [shape = 'u8[16384]{0}', space=vmem, size = 0x4000, scoped, tag = 'output window, operand 0, single buffered']
    %10 = vsyncpa [#allocation3], 0
    %11 = vsyncpa [#allocation6], 0
    %12 = vsyncpa [#allocation9], 0
    %13 = vsyncpa [#allocation4], 0
    // Predicated region
    $region2: #{tpu_custom_call.1} parent=1 // pred_check
      _
    $region3: #{tpu_custom_call.1} parent=1 // pred_check_branch
      %15 = sbr.rel (0) target = $region5
    $region4: #{tpu_custom_call.1} parent=1 // pred_region
      %17 = vsyncadd [#allocation3], 0
      %s18 = sshll.u32 %s0, 4
      %s19 = int_to_ptr.hbm [resolvable:$true] %s18
      %s20 = sshll.u32 [#allocation2], 4
      %s21 = int_to_ptr.vmem [resolvable:$true] %s20
      %26 = dma.hbm_to_vmem [thread:$0]  %s19, 256, %s21, [#allocation3], 128, 128, 8
    $region5: #{tpu_custom_call.1} parent=1 // pred_fallthru
      _
    // Predicated region
    $region6: #{tpu_custom_call.1} parent=1 // pred_check
      _
    $region7: #{tpu_custom_call.1} parent=1 // pred_check_branch
      %28 = sbr.rel (0) target = $region9
    $region8: #{tpu_custom_call.1} parent=1 // pred_region
      %30 = vsyncadd [#allocation6], 0
      %s31 = sshll.u32 %s1, 4
      %s32 = int_to_ptr.hbm [resolvable:$true] %s31
      %s33 = sshll.u32 [#allocation5], 4
      %s34 = int_to_ptr.vmem [resolvable:$true] %s33
      %39 = dma.hbm_to_vmem [thread:$0]  %s32, 6144, %s34, [#allocation6], 192, 192, 12
    $region9: #{tpu_custom_call.1} parent=1 // pred_fallthru
      _
    // Predicated region
    $region10: #{tpu_custom_call.1} parent=1 // pred_check
      _
    $region11: #{tpu_custom_call.1} parent=1 // pred_check_branch
      %41 = sbr.rel (0) target = $region13
    $region12: #{tpu_custom_call.1} parent=1 // pred_region
      %43 = vsyncadd [#allocation6], 0
      %s45 = sshll.u32 %s2, 4
      %s46 = int_to_ptr.hbm [resolvable:$true] %s45
      %s47 = sshll.u32 [#allocation7], 4
      %s48 = int_to_ptr.vmem [resolvable:$true] %s47
      %50 = dma.hbm_to_vmem [thread:$0]  %s46, 48, %s48, [#allocation6]
    $region13: #{tpu_custom_call.1} parent=1 // pred_fallthru
      _
    // Predicated region
    $region14: #{tpu_custom_call.1} parent=1 // pred_check
      _
    $region15: #{tpu_custom_call.1} parent=1 // pred_check_branch
      %52 = sbr.rel (0) target = $region17
    $region16: #{tpu_custom_call.1} parent=1 // pred_region
      %54 = vsyncadd [#allocation9], 0
      %s55 = sshll.u32 %s3, 4
      %s56 = int_to_ptr.hbm [resolvable:$true] %s55
      %s57 = sshll.u32 [#allocation8], 4
      %s58 = int_to_ptr.vmem [resolvable:$true] %s57
      %63 = dma.hbm_to_vmem [thread:$0]  %s56, 6144, %s58, [#allocation9], 128, 128, 8
    $region17: #{tpu_custom_call.1} parent=1 // pred_fallthru
      _
    // Predicated region
    $region18: #{tpu_custom_call.1} parent=1 // pred_check
      _
    $region19: #{tpu_custom_call.1} parent=1 // pred_check_branch
      %65 = sbr.rel (0) target = $region21
    $region20: #{tpu_custom_call.1} parent=1 // pred_region
      _
    $region21: #{tpu_custom_call.1} parent=1 // pred_fallthru
      _
    // Predicated region
    $region22: #{tpu_custom_call.1} parent=1 // pred_check
      _
    $region23: #{tpu_custom_call.1} parent=1 // pred_check_branch
      %67 = sbr.rel (0) target = $region25
    $region24: #{tpu_custom_call.1} parent=1 // pred_region
      %69 = dma.done [#allocation3], 256
    $region25: #{tpu_custom_call.1} parent=1 // pred_fallthru
      _
    // Predicated region
    $region26: #{tpu_custom_call.1} parent=1 // pred_check
      _
    $region27: #{tpu_custom_call.1} parent=1 // pred_check_branch
      %71 = sbr.rel (0) target = $region29
    $region28: #{tpu_custom_call.1} parent=1 // pred_region
      %73 = dma.done [#allocation6], 6144
    $region29: #{tpu_custom_call.1} parent=1 // pred_fallthru
      _
    // Predicated region
    $region30: #{tpu_custom_call.1} parent=1 // pred_check
      _
    $region31: #{tpu_custom_call.1} parent=1 // pred_check_branch
      %75 = sbr.rel (0) target = $region33
    $region32: #{tpu_custom_call.1} parent=1 // pred_region
      %77 = dma.done [#allocation6], 48
    $region33: #{tpu_custom_call.1} parent=1 // pred_fallthru
      _
    // Predicated region
    $region34: #{tpu_custom_call.1} parent=1 // pred_check
      _
    $region35: #{tpu_custom_call.1} parent=1 // pred_check_branch
      %79 = sbr.rel (0) target = $region37
    $region36: #{tpu_custom_call.1} parent=1 // pred_region
      %81 = dma.done [#allocation9], 6144
    $region37: #{tpu_custom_call.1} parent=1 // pred_fallthru
      _
    %v82 = vld [vmem:[#allocation2] sm:$0xff]
    %v83 = vld [vmem:[#allocation2 + $0x8] sm:$0xff]
    %v84 = vld [vmem:[#allocation5] sm:$0xff]
    %v85 = vld [vmem:[#allocation5 + $0x8] sm:$0xf]
    %v86 = vld [vmem:[#allocation5 + $0xc] sm:$0xff]
    %v87 = vld [vmem:[#allocation5 + $0x14] sm:$0xf]
    %v88 = vld [vmem:[#allocation5 + $0x18] sm:$0xff]
    %v89 = vld [vmem:[#allocation5 + $0x20] sm:$0xf]
    %v90 = vld [vmem:[#allocation5 + $0x24] sm:$0xff]
    %v91 = vld [vmem:[#allocation5 + $0x2c] sm:$0xf]
    %v92 = vld [vmem:[#allocation5 + $0x30] sm:$0xff]
    %v93 = vld [vmem:[#allocation5 + $0x38] sm:$0xf]
    %v94 = vld [vmem:[#allocation5 + $0x3c] sm:$0xff]
    %v95 = vld [vmem:[#allocation5 + $0x44] sm:$0xf]
    %v96 = vld [vmem:[#allocation5 + $0x48] sm:$0xff]
    %v97 = vld [vmem:[#allocation5 + $0x50] sm:$0xf]
    %v98 = vld [vmem:[#allocation5 + $0x54] sm:$0xff]
    %v99 = vld [vmem:[#allocation5 + $0x5c] sm:$0xf]
    %v100 = vld [vmem:[#allocation5 + $0x60] sm:$0xff]
    %v101 = vld [vmem:[#allocation5 + $0x68] sm:$0xf]
    %v102 = vld [vmem:[#allocation5 + $0x6c] sm:$0xff]
    %v103 = vld [vmem:[#allocation5 + $0x74] sm:$0xf]
    %v104 = vld [vmem:[#allocation5 + $0x78] sm:$0xff]
    %v105 = vld [vmem:[#allocation5 + $0x80] sm:$0xf]
    %v106 = vld [vmem:[#allocation5 + $0x84] sm:$0xff]
    %v107 = vld [vmem:[#allocation5 + $0x8c] sm:$0xf]
    %v108 = vld [vmem:[#allocation5 + $0x90] sm:$0xff]
    %v109 = vld [vmem:[#allocation5 + $0x98] sm:$0xf]
    %v110 = vld [vmem:[#allocation5 + $0x9c] sm:$0xff]
    %v111 = vld [vmem:[#allocation5 + $0xa4] sm:$0xf]
    %v112 = vld [vmem:[#allocation5 + $0xa8] sm:$0xff]
    %v113 = vld [vmem:[#allocation5 + $0xb0] sm:$0xf]
    %v114 = vld [vmem:[#allocation5 + $0xb4] sm:$0xff]
    %v115 = vld [vmem:[#allocation5 + $0xbc] sm:$0xf]
    %v116 = vld [vmem:[#allocation5 + $0xc0] sm:$0xff]
    %v117 = vld [vmem:[#allocation5 + $0xc8] sm:$0xf]
    %v118 = vld [vmem:[#allocation5 + $0xcc] sm:$0xff]
    %v119 = vld [vmem:[#allocation5 + $0xd4] sm:$0xf]
    %v120 = vld [vmem:[#allocation5 + $0xd8] sm:$0xff]
    %v121 = vld [vmem:[#allocation5 + $0xe0] sm:$0xf]
    %v122 = vld [vmem:[#allocation5 + $0xe4] sm:$0xff]
    %v123 = vld [vmem:[#allocation5 + $0xec] sm:$0xf]
    %v124 = vld [vmem:[#allocation5 + $0xf0] sm:$0xff]
    %v125 = vld [vmem:[#allocation5 + $0xf8] sm:$0xf]
    %v126 = vld [vmem:[#allocation5 + $0xfc] sm:$0xff]
    %v127 = vld [vmem:[#allocation5 + $0x104] sm:$0xf]
    %v128 = vld [vmem:[#allocation5 + $0x108] sm:$0xff]
    %v129 = vld [vmem:[#allocation5 + $0x110] sm:$0xf]
    %v130 = vld [vmem:[#allocation5 + $0x114] sm:$0xff]
    %v131 = vld [vmem:[#allocation5 + $0x11c] sm:$0xf]
    %v132 = vld [vmem:[#allocation5 + $0x120] sm:$0xff]
    %v133 = vld [vmem:[#allocation5 + $0x128] sm:$0xf]
    %v134 = vld [vmem:[#allocation5 + $0x12c] sm:$0xff]
    %v135 = vld [vmem:[#allocation5 + $0x134] sm:$0xf]
    %v136 = vld [vmem:[#allocation5 + $0x138] sm:$0xff]
    %v137 = vld [vmem:[#allocation5 + $0x140] sm:$0xf]
    %v138 = vld [vmem:[#allocation5 + $0x144] sm:$0xff]
    %v139 = vld [vmem:[#allocation5 + $0x14c] sm:$0xf]
    %v140 = vld [vmem:[#allocation5 + $0x150] sm:$0xff]
    %v141 = vld [vmem:[#allocation5 + $0x158] sm:$0xf]
    %v142 = vld [vmem:[#allocation5 + $0x15c] sm:$0xff]
    %v143 = vld [vmem:[#allocation5 + $0x164] sm:$0xf]
    %v144 = vld [vmem:[#allocation5 + $0x168] sm:$0xff]
    %v145 = vld [vmem:[#allocation5 + $0x170] sm:$0xf]
    %v146 = vld [vmem:[#allocation5 + $0x174] sm:$0xff]
    %v147 = vld [vmem:[#allocation5 + $0x17c] sm:$0xf]
    %v148 = vld [vmem:[#allocation7] sm:$0x7]
    %v150 = vperm.slane %v148, 0
    %v151 = vperm.slane %v148, 1
    %v152 = vperm.slane %v148, 2
    %v158 = vunpack.c.l.b16 %v82
    %v159 = vunpack.c.h.b16 %v82
    %v160 = vunpack.c.l.b16 %v83
    %v161 = vunpack.c.h.b16 %v83
    %v162 = vpack.c.b16 %v160, %v158
    %v163 = vpack.c.b16 %v161, %v159
    %v230 = vunpack.c.l.b16 %v84
    %v231 = vunpack.c.h.b16 %v84
    %v232 = vunpack.c.l.b16 %v85
    %v233 = vunpack.c.l.b16 %v86
    %v234 = vunpack.c.h.b16 %v86
    %v235 = vunpack.c.l.b16 %v87
    %v236 = vunpack.c.l.b16 %v88
    %v237 = vunpack.c.h.b16 %v88
    %v238 = vunpack.c.l.b16 %v89
    %v239 = vunpack.c.l.b16 %v90
    %v240 = vunpack.c.h.b16 %v90
    %v241 = vunpack.c.l.b16 %v91
    %v242 = vunpack.c.l.b16 %v92
    %v243 = vunpack.c.h.b16 %v92
    %v244 = vunpack.c.l.b16 %v93
    %v245 = vunpack.c.l.b16 %v94
    %v246 = vunpack.c.h.b16 %v94
    %v247 = vunpack.c.l.b16 %v95
    %v248 = vunpack.c.l.b16 %v96
    %v249 = vunpack.c.h.b16 %v96
    %v250 = vunpack.c.l.b16 %v97
    %v251 = vunpack.c.l.b16 %v98
    %v252 = vunpack.c.h.b16 %v98
    %v253 = vunpack.c.l.b16 %v99
    %v254 = vunpack.c.l.b16 %v100
    %v255 = vunpack.c.h.b16 %v100
    %v256 = vunpack.c.l.b16 %v101
    %v257 = vunpack.c.l.b16 %v102
    %v258 = vunpack.c.h.b16 %v102
    %v259 = vunpack.c.l.b16 %v103
    %v260 = vunpack.c.l.b16 %v104
    %v261 = vunpack.c.h.b16 %v104
    %v262 = vunpack.c.l.b16 %v105
    %v263 = vunpack.c.l.b16 %v106
    %v264 = vunpack.c.h.b16 %v106
    %v265 = vunpack.c.l.b16 %v107
    %v266 = vunpack.c.l.b16 %v108
    %v267 = vunpack.c.h.b16 %v108
    %v268 = vunpack.c.l.b16 %v109
    %v269 = vunpack.c.l.b16 %v110
    %v270 = vunpack.c.h.b16 %v110
    %v271 = vunpack.c.l.b16 %v111
    %v272 = vunpack.c.l.b16 %v112
    %v273 = vunpack.c.h.b16 %v112
    %v274 = vunpack.c.l.b16 %v113
    %v275 = vunpack.c.l.b16 %v114
    %v276 = vunpack.c.h.b16 %v114
    %v277 = vunpack.c.l.b16 %v115
    %v278 = vunpack.c.l.b16 %v116
    %v279 = vunpack.c.h.b16 %v116
    %v280 = vunpack.c.l.b16 %v117
    %v281 = vunpack.c.l.b16 %v118
    %v282 = vunpack.c.h.b16 %v118
    %v283 = vunpack.c.l.b16 %v119
    %v284 = vunpack.c.l.b16 %v120
    %v285 = vunpack.c.h.b16 %v120
    %v286 = vunpack.c.l.b16 %v121
    %v287 = vunpack.c.l.b16 %v122
    %v288 = vunpack.c.h.b16 %v122
    %v289 = vunpack.c.l.b16 %v123
    %v290 = vunpack.c.l.b16 %v124
    %v291 = vunpack.c.h.b16 %v124
    %v292 = vunpack.c.l.b16 %v125
    %v293 = vunpack.c.l.b16 %v126
    %v294 = vunpack.c.h.b16 %v126
    %v295 = vunpack.c.l.b16 %v127
    %v296 = vunpack.c.l.b16 %v128
    %v297 = vunpack.c.h.b16 %v128
    %v298 = vunpack.c.l.b16 %v129
    %v299 = vunpack.c.l.b16 %v130
    %v300 = vunpack.c.h.b16 %v130
    %v301 = vunpack.c.l.b16 %v131
    %v302 = vunpack.c.l.b16 %v132
    %v303 = vunpack.c.h.b16 %v132
    %v304 = vunpack.c.l.b16 %v133
    %v305 = vunpack.c.l.b16 %v134
    %v306 = vunpack.c.h.b16 %v134
    %v307 = vunpack.c.l.b16 %v135
    %v308 = vunpack.c.l.b16 %v136
    %v309 = vunpack.c.h.b16 %v136
    %v310 = vunpack.c.l.b16 %v137
    %v311 = vunpack.c.l.b16 %v138
    %v312 = vunpack.c.h.b16 %v138
    %v313 = vunpack.c.l.b16 %v139
    %v314 = vunpack.c.l.b16 %v140
    %v315 = vunpack.c.h.b16 %v140
    %v316 = vunpack.c.l.b16 %v141
    %v317 = vunpack.c.l.b16 %v142
    %v318 = vunpack.c.h.b16 %v142
    %v319 = vunpack.c.l.b16 %v143
    %v320 = vunpack.c.l.b16 %v144
    %v321 = vunpack.c.h.b16 %v144
    %v322 = vunpack.c.l.b16 %v145
    %v323 = vunpack.c.l.b16 %v146
    %v324 = vunpack.c.h.b16 %v146
    %v325 = vunpack.c.l.b16 %v147
    %v326 = vpack.c.b16 %v233, %v230
    %v327 = vpack.c.b16 %v234, %v231
    %v328 = vpack.c.b16 %v235, %v232
    %v329 = vpack.c.b16 %v239, %v236
    %v330 = vpack.c.b16 %v240, %v237
    %v331 = vpack.c.b16 %v241, %v238
    %v332 = vpack.c.b16 %v245, %v242
    %v333 = vpack.c.b16 %v246, %v243
    %v334 = vpack.c.b16 %v247, %v244
    %v335 = vpack.c.b16 %v251, %v248
    %v336 = vpack.c.b16 %v252, %v249
    %v337 = vpack.c.b16 %v253, %v250
    %v338 = vpack.c.b16 %v257, %v254
    %v339 = vpack.c.b16 %v258, %v255
    %v340 = vpack.c.b16 %v259, %v256
    %v341 = vpack.c.b16 %v263, %v260
    %v342 = vpack.c.b16 %v264, %v261
    %v343 = vpack.c.b16 %v265, %v262
    %v344 = vpack.c.b16 %v269, %v266
    %v345 = vpack.c.b16 %v270, %v267
    %v346 = vpack.c.b16 %v271, %v268
    %v347 = vpack.c.b16 %v275, %v272
    %v348 = vpack.c.b16 %v276, %v273
    %v349 = vpack.c.b16 %v277, %v274
    %v350 = vpack.c.b16 %v281, %v278
    %v351 = vpack.c.b16 %v282, %v279
    %v352 = vpack.c.b16 %v283, %v280
    %v353 = vpack.c.b16 %v287, %v284
    %v354 = vpack.c.b16 %v288, %v285
    %v355 = vpack.c.b16 %v289, %v286
    %v356 = vpack.c.b16 %v293, %v290
    %v357 = vpack.c.b16 %v294, %v291
    %v358 = vpack.c.b16 %v295, %v292
    %v359 = vpack.c.b16 %v299, %v296
    %v360 = vpack.c.b16 %v300, %v297
    %v361 = vpack.c.b16 %v301, %v298
    %v362 = vpack.c.b16 %v305, %v302
    %v363 = vpack.c.b16 %v306, %v303
    %v364 = vpack.c.b16 %v307, %v304
    %v365 = vpack.c.b16 %v311, %v308
    %v366 = vpack.c.b16 %v312, %v309
    %v367 = vpack.c.b16 %v313, %v310
    %v368 = vpack.c.b16 %v317, %v314
    %v369 = vpack.c.b16 %v318, %v315
    %v370 = vpack.c.b16 %v319, %v316
    %v371 = vpack.c.b16 %v323, %v320
    %v372 = vpack.c.b16 %v324, %v321
    %v373 = vpack.c.b16 %v325, %v322
    %422 = vmatpush.bf16.msra.mxu0 %v347
    %423 = vmatpush.bf16.msra.mxu0 %v344
    %424 = vmatpush.bf16.msra.mxu0 %v341
    %425 = vmatpush.bf16.msra.mxu0 %v338
    %426 = vmatpush.bf16.msra.mxu0 %v335
    %427 = vmatpush.bf16.msra.mxu0 %v332
    %428 = vmatpush.bf16.msra.mxu0 %v329
    %429 = vmatpush.bf16.msra.mxu0 %v326
    %430 = vmatmul.bf16.gmra.mxu0 %v162
    %v431 = vpop.f32.mrf.mxu0
    %v432 = vadd.f32 %v150, %v431
    %v433 = vpop.f32.mrf.mxu0
    %v434 = vadd.f32 %v150, %v433
    %435 = vdwg.mxu0
    %436 = vmatpush.bf16.msra.mxu0 %v371
    %437 = vmatpush.bf16.msra.mxu0 %v368
    %438 = vmatpush.bf16.msra.mxu0 %v365
    %439 = vmatpush.bf16.msra.mxu0 %v362
    %440 = vmatpush.bf16.msra.mxu0 %v359
    %441 = vmatpush.bf16.msra.mxu0 %v356
    %442 = vmatpush.bf16.msra.mxu0 %v353
    %443 = vmatpush.bf16.msra.mxu0 %v350
    %444 = vmatmul.bf16.gmra.mxu0 %v163
    %v445 = vpop.f32.mrf.mxu0
    %v446 = vadd.f32 %v432, %v445
    %v447 = vpop.f32.mrf.mxu0
    %v448 = vadd.f32 %v434, %v447
    %449 = vdwg.mxu0
    %450 = vmatpush.bf16.msra.mxu0 %v348
    %451 = vmatpush.bf16.msra.mxu0 %v345
    %452 = vmatpush.bf16.msra.mxu0 %v342
    %453 = vmatpush.bf16.msra.mxu0 %v339
    %454 = vmatpush.bf16.msra.mxu0 %v336
    %455 = vmatpush.bf16.msra.mxu0 %v333
    %456 = vmatpush.bf16.msra.mxu0 %v330
    %457 = vmatpush.bf16.msra.mxu0 %v327
    %458 = vmatmul.bf16.gmra.mxu0 %v162
    %v459 = vpop.f32.mrf.mxu0
    %v460 = vadd.f32 %v151, %v459
    %v461 = vpop.f32.mrf.mxu0
    %v462 = vadd.f32 %v151, %v461
    %463 = vdwg.mxu0
    %464 = vmatpush.bf16.msra.mxu0 %v372
    %465 = vmatpush.bf16.msra.mxu0 %v369
    %466 = vmatpush.bf16.msra.mxu0 %v366
    %467 = vmatpush.bf16.msra.mxu0 %v363
    %468 = vmatpush.bf16.msra.mxu0 %v360
    %469 = vmatpush.bf16.msra.mxu0 %v357
    %470 = vmatpush.bf16.msra.mxu0 %v354
    %471 = vmatpush.bf16.msra.mxu0 %v351
    %472 = vmatmul.bf16.gmra.mxu0 %v163
    %v473 = vpop.f32.mrf.mxu0
    %v474 = vadd.f32 %v460, %v473
    %v475 = vpop.f32.mrf.mxu0
    %v476 = vadd.f32 %v462, %v475
    %477 = vdwg.mxu0
    %478 = vmatpush.bf16.msra.mxu0 %v349
    %479 = vmatpush.bf16.msra.mxu0 %v346
    %480 = vmatpush.bf16.msra.mxu0 %v343
    %481 = vmatpush.bf16.msra.mxu0 %v340
    %482 = vmatpush.bf16.msra.mxu0 %v337
    %483 = vmatpush.bf16.msra.mxu0 %v334
    %484 = vmatpush.bf16.msra.mxu0 %v331
    %485 = vmatpush.bf16.msra.mxu0 %v328
    %486 = vmatmul.bf16.gmra.mxu0 %v162
    %v487 = vpop.f32.mrf.mxu0
    %v488 = vadd.f32 %v152, %v487
    %v489 = vpop.f32.mrf.mxu0
    %v490 = vadd.f32 %v152, %v489
    %491 = vdwg.mxu0
    %492 = vmatpush.bf16.msra.mxu0 %v373
    %493 = vmatpush.bf16.msra.mxu0 %v370
    %494 = vmatpush.bf16.msra.mxu0 %v367
    %495 = vmatpush.bf16.msra.mxu0 %v364
    %496 = vmatpush.bf16.msra.mxu0 %v361
    %497 = vmatpush.bf16.msra.mxu0 %v358
    %498 = vmatpush.bf16.msra.mxu0 %v355
    %499 = vmatpush.bf16.msra.mxu0 %v352
    %500 = vmatmul.bf16.gmra.mxu0 %v163
    %v501 = vpop.f32.mrf.mxu0
    %v502 = vadd.f32 %v488, %v501
    %v503 = vpop.f32.mrf.mxu0
    %v504 = vadd.f32 %v490, %v503
    %505 = vdwg.mxu0
    %v506 = vmax.f32 %v446, 0.0
    %v507 = vmax.f32 %v474, 0.0
    %v508 = vmax.f32 %v502, 0.0
    %v509 = vmax.f32 %v448, 0.0
    %v510 = vmax.f32 %v476, 0.0
    %v511 = vmax.f32 %v504, 0.0
    %v512 = vpack.c.bf16 %v509, %v506
    %v513 = vpack.c.bf16 %v510, %v507
    %v514 = vpack.c.bf16 %v511, %v508
    %v515 = vld [vmem:[#allocation8] sm:$0xff]
    %v516 = vld [vmem:[#allocation8 + $0x8] sm:$0xff]
    %v517 = vld [vmem:[#allocation8 + $0x10] sm:$0xff]
    %v518 = vld [vmem:[#allocation8 + $0x18] sm:$0xff]
    %v519 = vld [vmem:[#allocation8 + $0x20] sm:$0xff]
    %v520 = vld [vmem:[#allocation8 + $0x28] sm:$0xff]
    %v521 = vld [vmem:[#allocation8 + $0x30] sm:$0xff]
    %v522 = vld [vmem:[#allocation8 + $0x38] sm:$0xff]
    %v523 = vld [vmem:[#allocation8 + $0x40] sm:$0xff]
    %v524 = vld [vmem:[#allocation8 + $0x48] sm:$0xff]
    %v525 = vld [vmem:[#allocation8 + $0x50] sm:$0xff]
    %v526 = vld [vmem:[#allocation8 + $0x58] sm:$0xff]
    %v527 = vld [vmem:[#allocation8 + $0x60] sm:$0xff]
    %v528 = vld [vmem:[#allocation8 + $0x68] sm:$0xff]
    %v529 = vld [vmem:[#allocation8 + $0x70] sm:$0xff]
    %v530 = vld [vmem:[#allocation8 + $0x78] sm:$0xff]
    %v531 = vld [vmem:[#allocation8 + $0x80] sm:$0xff]
    %v532 = vld [vmem:[#allocation8 + $0x88] sm:$0xff]
    %v533 = vld [vmem:[#allocation8 + $0x90] sm:$0xff]
    %v534 = vld [vmem:[#allocation8 + $0x98] sm:$0xff]
    %v535 = vld [vmem:[#allocation8 + $0xa0] sm:$0xff]
    %v536 = vld [vmem:[#allocation8 + $0xa8] sm:$0xff]
    %v537 = vld [vmem:[#allocation8 + $0xb0] sm:$0xff]
    %v538 = vld [vmem:[#allocation8 + $0xb8] sm:$0xff]
    %v539 = vld [vmem:[#allocation8 + $0xc0] sm:$0xff]
    %v540 = vld [vmem:[#allocation8 + $0xc8] sm:$0xff]
    %v541 = vld [vmem:[#allocation8 + $0xd0] sm:$0xff]
    %v542 = vld [vmem:[#allocation8 + $0xd8] sm:$0xff]
    %v543 = vld [vmem:[#allocation8 + $0xe0] sm:$0xff]
    %v544 = vld [vmem:[#allocation8 + $0xe8] sm:$0xff]
    %v545 = vld [vmem:[#allocation8 + $0xf0] sm:$0xff]
    %v546 = vld [vmem:[#allocation8 + $0xf8] sm:$0xff]
    %v547 = vld [vmem:[#allocation8 + $0x100] sm:$0xff]
    %v548 = vld [vmem:[#allocation8 + $0x108] sm:$0xff]
    %v549 = vld [vmem:[#allocation8 + $0x110] sm:$0xff]
    %v550 = vld [vmem:[#allocation8 + $0x118] sm:$0xff]
    %v551 = vld [vmem:[#allocation8 + $0x120] sm:$0xff]
    %v552 = vld [vmem:[#allocation8 + $0x128] sm:$0xff]
    %v553 = vld [vmem:[#allocation8 + $0x130] sm:$0xff]
    %v554 = vld [vmem:[#allocation8 + $0x138] sm:$0xff]
    %v555 = vld [vmem:[#allocation8 + $0x140] sm:$0xff]
    %v556 = vld [vmem:[#allocation8 + $0x148] sm:$0xff]
    %v557 = vld [vmem:[#allocation8 + $0x150] sm:$0xff]
    %v558 = vld [vmem:[#allocation8 + $0x158] sm:$0xff]
    %v559 = vld [vmem:[#allocation8 + $0x160] sm:$0xff]
    %v560 = vld [vmem:[#allocation8 + $0x168] sm:$0xff]
    %v561 = vld [vmem:[#allocation8 + $0x170] sm:$0xff]
    %v562 = vld [vmem:[#allocation8 + $0x178] sm:$0xff]
    %v563 = vld [vmem:[%s4] sm:$0x3]
    %v565 = vperm.slane %v563, 0
    %v566 = vperm.slane %v563, 1
    %v617 = vunpack.c.l.b16 %v515
    %v618 = vunpack.c.h.b16 %v515
    %v619 = vunpack.c.l.b16 %v516
    %v620 = vunpack.c.h.b16 %v516
    %v621 = vunpack.c.l.b16 %v517
    %v622 = vunpack.c.h.b16 %v517
    %v623 = vunpack.c.l.b16 %v518
    %v624 = vunpack.c.h.b16 %v518
    %v625 = vunpack.c.l.b16 %v519
    %v626 = vunpack.c.h.b16 %v519
    %v627 = vunpack.c.l.b16 %v520
    %v628 = vunpack.c.h.b16 %v520
    %v629 = vunpack.c.l.b16 %v521
    %v630 = vunpack.c.h.b16 %v521
    %v631 = vunpack.c.l.b16 %v522
    %v632 = vunpack.c.h.b16 %v522
    %v633 = vunpack.c.l.b16 %v523
    %v634 = vunpack.c.h.b16 %v523
    %v635 = vunpack.c.l.b16 %v524
    %v636 = vunpack.c.h.b16 %v524
    %v637 = vunpack.c.l.b16 %v525
    %v638 = vunpack.c.h.b16 %v525
    %v639 = vunpack.c.l.b16 %v526
    %v640 = vunpack.c.h.b16 %v526
    %v641 = vunpack.c.l.b16 %v527
    %v642 = vunpack.c.h.b16 %v527
    %v643 = vunpack.c.l.b16 %v528
    %v644 = vunpack.c.h.b16 %v528
    %v645 = vunpack.c.l.b16 %v529
    %v646 = vunpack.c.h.b16 %v529
    %v647 = vunpack.c.l.b16 %v530
    %v648 = vunpack.c.h.b16 %v530
    %v649 = vunpack.c.l.b16 %v531
    %v650 = vunpack.c.h.b16 %v531
    %v651 = vunpack.c.l.b16 %v532
    %v652 = vunpack.c.h.b16 %v532
    %v653 = vunpack.c.l.b16 %v533
    %v654 = vunpack.c.h.b16 %v533
    %v655 = vunpack.c.l.b16 %v534
    %v656 = vunpack.c.h.b16 %v534
    %v657 = vunpack.c.l.b16 %v535
    %v658 = vunpack.c.h.b16 %v535
    %v659 = vunpack.c.l.b16 %v536
    %v660 = vunpack.c.h.b16 %v536
    %v661 = vunpack.c.l.b16 %v537
    %v662 = vunpack.c.h.b16 %v537
    %v663 = vunpack.c.l.b16 %v538
    %v664 = vunpack.c.h.b16 %v538
    %v665 = vunpack.c.l.b16 %v539
    %v666 = vunpack.c.h.b16 %v539
    %v667 = vunpack.c.l.b16 %v540
    %v668 = vunpack.c.h.b16 %v540
    %v669 = vunpack.c.l.b16 %v541
    %v670 = vunpack.c.h.b16 %v541
    %v671 = vunpack.c.l.b16 %v542
    %v672 = vunpack.c.h.b16 %v542
    %v673 = vunpack.c.l.b16 %v543
    %v674 = vunpack.c.h.b16 %v543
    %v675 = vunpack.c.l.b16 %v544
    %v676 = vunpack.c.h.b16 %v544
    %v677 = vunpack.c.l.b16 %v545
    %v678 = vunpack.c.h.b16 %v545
    %v679 = vunpack.c.l.b16 %v546
    %v680 = vunpack.c.h.b16 %v546
    %v681 = vunpack.c.l.b16 %v547
    %v682 = vunpack.c.h.b16 %v547
    %v683 = vunpack.c.l.b16 %v548
    %v684 = vunpack.c.h.b16 %v548
    %v685 = vunpack.c.l.b16 %v549
    %v686 = vunpack.c.h.b16 %v549
    %v687 = vunpack.c.l.b16 %v550
    %v688 = vunpack.c.h.b16 %v550
    %v689 = vunpack.c.l.b16 %v551
    %v690 = vunpack.c.h.b16 %v551
    %v691 = vunpack.c.l.b16 %v552
    %v692 = vunpack.c.h.b16 %v552
    %v693 = vunpack.c.l.b16 %v553
    %v694 = vunpack.c.h.b16 %v553
    %v695 = vunpack.c.l.b16 %v554
    %v696 = vunpack.c.h.b16 %v554
    %v697 = vunpack.c.l.b16 %v555
    %v698 = vunpack.c.h.b16 %v555
    %v699 = vunpack.c.l.b16 %v556
    %v700 = vunpack.c.h.b16 %v556
    %v701 = vunpack.c.l.b16 %v557
    %v702 = vunpack.c.h.b16 %v557
    %v703 = vunpack.c.l.b16 %v558
    %v704 = vunpack.c.h.b16 %v558
    %v705 = vunpack.c.l.b16 %v559
    %v706 = vunpack.c.h.b16 %v559
    %v707 = vunpack.c.l.b16 %v560
    %v708 = vunpack.c.h.b16 %v560
    %v709 = vunpack.c.l.b16 %v561
    %v710 = vunpack.c.h.b16 %v561
    %v711 = vunpack.c.l.b16 %v562
    %v712 = vunpack.c.h.b16 %v562
    %v713 = vpack.c.b16 %v619, %v617
    %v714 = vpack.c.b16 %v620, %v618
    %v715 = vpack.c.b16 %v623, %v621
    %v716 = vpack.c.b16 %v624, %v622
    %v717 = vpack.c.b16 %v627, %v625
    %v718 = vpack.c.b16 %v628, %v626
    %v719 = vpack.c.b16 %v631, %v629
    %v720 = vpack.c.b16 %v632, %v630
    %v721 = vpack.c.b16 %v635, %v633
    %v722 = vpack.c.b16 %v636, %v634
    %v723 = vpack.c.b16 %v639, %v637
    %v724 = vpack.c.b16 %v640, %v638
    %v725 = vpack.c.b16 %v643, %v641
    %v726 = vpack.c.b16 %v644, %v642
    %v727 = vpack.c.b16 %v647, %v645
    %v728 = vpack.c.b16 %v648, %v646
    %v729 = vpack.c.b16 %v651, %v649
    %v730 = vpack.c.b16 %v652, %v650
    %v731 = vpack.c.b16 %v655, %v653
    %v732 = vpack.c.b16 %v656, %v654
    %v733 = vpack.c.b16 %v659, %v657
    %v734 = vpack.c.b16 %v660, %v658
    %v735 = vpack.c.b16 %v663, %v661
    %v736 = vpack.c.b16 %v664, %v662
    %v737 = vpack.c.b16 %v667, %v665
    %v738 = vpack.c.b16 %v668, %v666
    %v739 = vpack.c.b16 %v671, %v669
    %v740 = vpack.c.b16 %v672, %v670
    %v741 = vpack.c.b16 %v675, %v673
    %v742 = vpack.c.b16 %v676, %v674
    %v743 = vpack.c.b16 %v679, %v677
    %v744 = vpack.c.b16 %v680, %v678
    %v745 = vpack.c.b16 %v683, %v681
    %v746 = vpack.c.b16 %v684, %v682
    %v747 = vpack.c.b16 %v687, %v685
    %v748 = vpack.c.b16 %v688, %v686
    %v749 = vpack.c.b16 %v691, %v689
    %v750 = vpack.c.b16 %v692, %v690
    %v751 = vpack.c.b16 %v695, %v693
    %v752 = vpack.c.b16 %v696, %v694
    %v753 = vpack.c.b16 %v699, %v697
    %v754 = vpack.c.b16 %v700, %v698
    %v755 = vpack.c.b16 %v703, %v701
    %v756 = vpack.c.b16 %v704, %v702
    %v757 = vpack.c.b16 %v707, %v705
    %v758 = vpack.c.b16 %v708, %v706
    %v759 = vpack.c.b16 %v711, %v709
    %v760 = vpack.c.b16 %v712, %v710
    %809 = vmatpush.bf16.msra.mxu0 %v727
    %810 = vmatpush.bf16.msra.mxu0 %v725
    %811 = vmatpush.bf16.msra.mxu0 %v723
    %812 = vmatpush.bf16.msra.mxu0 %v721
    %813 = vmatpush.bf16.msra.mxu0 %v719
    %814 = vmatpush.bf16.msra.mxu0 %v717
    %815 = vmatpush.bf16.msra.mxu0 %v715
    %816 = vmatpush.bf16.msra.mxu0 %v713
    %817 = vmatmul.bf16.gmra.mxu0 %v512
    %v818 = vpop.f32.mrf.mxu0
    %v819 = vadd.f32 %v565, %v818
    %v820 = vpop.f32.mrf.mxu0
    %v821 = vadd.f32 %v565, %v820
    %822 = vdwg.mxu0
    %823 = vmatpush.bf16.msra.mxu0 %v743
    %824 = vmatpush.bf16.msra.mxu0 %v741
    %825 = vmatpush.bf16.msra.mxu0 %v739
    %826 = vmatpush.bf16.msra.mxu0 %v737
    %827 = vmatpush.bf16.msra.mxu0 %v735
    %828 = vmatpush.bf16.msra.mxu0 %v733
    %829 = vmatpush.bf16.msra.mxu0 %v731
    %830 = vmatpush.bf16.msra.mxu0 %v729
    %831 = vmatmul.bf16.gmra.mxu0 %v513
    %v832 = vpop.f32.mrf.mxu0
    %v833 = vadd.f32 %v819, %v832
    %v834 = vpop.f32.mrf.mxu0
    %v835 = vadd.f32 %v821, %v834
    %836 = vdwg.mxu0
    %837 = vmatpush.bf16.msra.mxu0 %v759
    %838 = vmatpush.bf16.msra.mxu0 %v757
    %839 = vmatpush.bf16.msra.mxu0 %v755
    %840 = vmatpush.bf16.msra.mxu0 %v753
    %841 = vmatpush.bf16.msra.mxu0 %v751
    %842 = vmatpush.bf16.msra.mxu0 %v749
    %843 = vmatpush.bf16.msra.mxu0 %v747
    %844 = vmatpush.bf16.msra.mxu0 %v745
    %845 = vmatmul.bf16.gmra.mxu0 %v514
    %v846 = vpop.f32.mrf.mxu0
    %v847 = vadd.f32 %v833, %v846
    %v848 = vpop.f32.mrf.mxu0
    %v849 = vadd.f32 %v835, %v848
    %850 = vdwg.mxu0
    %851 = vmatpush.bf16.msra.mxu0 %v728
    %852 = vmatpush.bf16.msra.mxu0 %v726
    %853 = vmatpush.bf16.msra.mxu0 %v724
    %854 = vmatpush.bf16.msra.mxu0 %v722
    %855 = vmatpush.bf16.msra.mxu0 %v720
    %856 = vmatpush.bf16.msra.mxu0 %v718
    %857 = vmatpush.bf16.msra.mxu0 %v716
    %858 = vmatpush.bf16.msra.mxu0 %v714
    %859 = vmatmul.bf16.gmra.mxu0 %v512
    %v860 = vpop.f32.mrf.mxu0
    %v861 = vadd.f32 %v566, %v860
    %v862 = vpop.f32.mrf.mxu0
    %v863 = vadd.f32 %v566, %v862
    %864 = vdwg.mxu0
    %865 = vmatpush.bf16.msra.mxu0 %v744
    %866 = vmatpush.bf16.msra.mxu0 %v742
    %867 = vmatpush.bf16.msra.mxu0 %v740
    %868 = vmatpush.bf16.msra.mxu0 %v738
    %869 = vmatpush.bf16.msra.mxu0 %v736
    %870 = vmatpush.bf16.msra.mxu0 %v734
    %871 = vmatpush.bf16.msra.mxu0 %v732
    %872 = vmatpush.bf16.msra.mxu0 %v730
    %873 = vmatmul.bf16.gmra.mxu0 %v513
    %v874 = vpop.f32.mrf.mxu0
    %v875 = vadd.f32 %v861, %v874
    %v876 = vpop.f32.mrf.mxu0
    %v877 = vadd.f32 %v863, %v876
    %878 = vdwg.mxu0
    %879 = vmatpush.bf16.msra.mxu0 %v760
    %880 = vmatpush.bf16.msra.mxu0 %v758
    %881 = vmatpush.bf16.msra.mxu0 %v756
    %882 = vmatpush.bf16.msra.mxu0 %v754
    %883 = vmatpush.bf16.msra.mxu0 %v752
    %884 = vmatpush.bf16.msra.mxu0 %v750
    %885 = vmatpush.bf16.msra.mxu0 %v748
    %886 = vmatpush.bf16.msra.mxu0 %v746
    %887 = vmatmul.bf16.gmra.mxu0 %v514
    %v888 = vpop.f32.mrf.mxu0
    %v889 = vadd.f32 %v875, %v888
    %v890 = vpop.f32.mrf.mxu0
    %v891 = vadd.f32 %v877, %v890
    %892 = vdwg.mxu0
    %893 = vst [vmem:[#allocation10] sm:$0xff] %v847
    %894 = vst [vmem:[#allocation10 + $0x8] sm:$0xff] %v889
    %895 = vst [vmem:[#allocation10 + $0x10] sm:$0xff] %v849
    %896 = vst [vmem:[#allocation10 + $0x18] sm:$0xff] %v891
    // Predicated region
    $region38: #{tpu_custom_call.1} parent=1 // pred_check
      _
    $region39: #{tpu_custom_call.1} parent=1 // pred_check_branch
      %898 = sbr.rel (0) target = $region41
    $region40: #{tpu_custom_call.1} parent=1 // pred_region
      %900 = vsyncadd [#allocation4], 0
      %s901 = sshll.u32 [#allocation10], 4
      %s902 = int_to_ptr.vmem [resolvable:$true] %s901
      %s903 = sshll.u32 %s5, 4
      %s904 = int_to_ptr.hbm [resolvable:$true] %s903
      %909 = dma.vmem_to_hbm [thread:$0]  %s902, 512, %s904, [#allocation4], 256, 256, 16
    $region41: #{tpu_custom_call.1} parent=1 // pred_fallthru
      _
    // Predicated region
    $region42: #{tpu_custom_call.1} parent=1 // pred_check
      _
    $region43: #{tpu_custom_call.1} parent=1 // pred_check_branch
      %911 = sbr.rel (0) target = $region45
    $region44: #{tpu_custom_call.1} parent=1 // pred_region
      %913 = dma.done [#allocation4], 512
    $region45: #{tpu_custom_call.1} parent=1 // pred_fallthru
      _
    %914 = vsyncpa [#allocation3], 1
    %915 = vsyncpa [#allocation6], 1
    %916 = vsyncpa [#allocation9], 1
    %917 = vsyncpa [#allocation4], 1

</llo_original>
